<compile_context>
chip_gen: v6e
topology: v6e:2x2x1
jax: 0.10.0
libtpu: 0.0.40
codegen_flags: <defaults>
</compile_context>

<pallas_src>
import jax
import jax.numpy as jnp
from jax import lax
from jax.experimental import pallas as pl
from jax.experimental.pallas import tpu as pltpu

INPUT_SIZE = 12
HIDDEN_SIZE = 128
NUM_LAYERS = 3
NEG_SLOPE = 0.01  # F.leaky_relu default


def _round_up(a, b):
    return -(-a // b) * b


def _leaky_relu(x):
    # max(x, a*x) == leaky_relu(x) for 0 <= a <= 1 (mul+max, no cmp/select).
    return jnp.maximum(x, NEG_SLOPE * x)


def _num_tensorcores():
    """Best-effort TensorCores-per-device count (megacore v4/v5p, v7x).
    Perf hint only -- the kernel is correct either way."""
    try:
        kind = jax.devices()[0].device_kind.lower().replace(" ", "")
    except Exception:
        return 1
    return 2 if any(t in kind for t in ("v4", "v5p", "v7", "7x")) else 1


def _pick_tile(n, tm_max, num_cores):
    """Lane-tile size.
      * n <= tm_max: one full-extent step on single-TC chips (no forced split);
        on 2-TC chips split into exactly two 128-aligned tiles when n >= 256.
      * n > tm_max: tiles as large as allowed (amortize ~0.35us/step overhead,
        fill the MXU), 128-aligned, with an even step count on 2-TC chips so
        both TensorCores get equal work.
    """
    tm_max = max(128, int(tm_max))
    if n <= tm_max:
        if num_cores >= 2 and n >= 256:
            return _round_up(pl.cdiv(n, 2), 128)   # exactly 2 steps
        return n                                   # single full-extent block
    steps = pl.cdiv(n, tm_max)
    if num_cores >= 2:
        steps = _round_up(steps, 2)
    return _round_up(pl.cdiv(n, steps), 128)


def _mlp_kernel(x_ref, w_in_ref, b_in_ref, w_h_ref, b_h_ref,
                w_out_ref, b_out_ref, mask_ref, o_ref):
    # x_ref:    (TM, F) bf16, tracks on sublanes, features on lanes.
    # w_in_ref: (H, F) bf16;  w_h_ref: (L, H, H) bf16 (resident across grid).
    # Everything downstream is (H, TM): hidden on sublanes, tracks on lanes.
    num_layers = w_h_ref.shape[0]

    # Input layer: contract the feature dim of both operands (w_in @ x^T)
    # directly on the MXU -- no wrapper transpose, no in-kernel transpose op.
    h = lax.dot_general(w_in_ref[...], x_ref[...],
                        dimension_numbers=(((1,), (1,)), ((), ())),
                        preferred_element_type=jnp.float32)       # (H, TM) f32
    h = _leaky_relu(h + b_in_ref[...])

    # Residual hidden layers (num_layers small & static: unrolled).
    for i in range(num_layers):
        z = jnp.dot(w_h_ref[i], h.astype(jnp.bfloat16),
                    preferred_element_type=jnp.float32)
        h = _leaky_relu(z + b_h_ref[i]) + h

    # Output head (HIDDEN -> 1): VPU multiply + sublane (XLU) reduction.
    # Cheaper than a width-1 MXU matmul and lands lane-dense as (1, TM).
    y = jnp.sum(h * w_out_ref[...], axis=0, keepdims=True) + b_out_ref[...]
    o_ref[...] = (y * mask_ref[...]).astype(o_ref.dtype)


def track_mlp_classifier(x, params, mask=None, *, tm=4096):
    """x: (batch, num_tracks, input_size); mask: optional (batch, num_tracks).
    Returns (batch, num_tracks, 1) f32 logits (pre-sigmoid), masked if given."""
    batch, num_tracks, input_size = x.shape
    n = batch * num_tracks
    w_in, b_in, w_h, b_h, w_out, b_out = params
    hidden = w_in.shape[0]
    num_layers = w_h.shape[0]

    tile = _pick_tile(n, tm, _num_tensorcores())
    grid = (pl.cdiv(n, tile),)

    # Only wrapper-side work on x: a free reshape plus one bf16 cast
    # (halves kernel DMA bytes). No transpose, no pad -- Pallas handles the
    # ragged tail block; tail lanes are don't-care (no cross-lane reduction,
    # out-of-bounds stores dropped, and we slice [:n] below anyway).
    x2 = x.reshape(n, input_size).astype(jnp.bfloat16)

    if mask is None:
        mask_row = jnp.ones((1, n), jnp.float32)
    else:
        mask_row = mask.reshape(1, n).astype(jnp.float32)

    full2 = lambda i: (0, 0)
    full3 = lambda i: (0, 0, 0)

    out = pl.pallas_call(
        _mlp_kernel,
        out_shape=jax.ShapeDtypeStruct((1, n), jnp.float32),
        grid_spec=pltpu.PrefetchScalarGridSpec(
            num_scalar_prefetch=0,
            grid=grid,
            in_specs=[
                pl.BlockSpec((tile, input_size), lambda i: (i, 0)),   # x tile (bf16)
                pl.BlockSpec((hidden, input_size), full2),            # w_in  (bf16)
                pl.BlockSpec((hidden, 1), full2),                     # b_in  (f32)
                pl.BlockSpec((num_layers, hidden, hidden), full3),    # w_h   (bf16)
                pl.BlockSpec((num_layers, hidden, 1), full3),         # b_h   (f32)
                pl.BlockSpec((hidden, 1), full2),                     # w_out column (f32)
                pl.BlockSpec((1, 1), full2),                          # b_out (f32)
                pl.BlockSpec((1, tile), lambda i: (0, i)),            # mask row
            ],
            out_specs=pl.BlockSpec((1, tile), lambda i: (0, i)),
        ),
        compiler_params=pltpu.CompilerParams(
            dimension_semantics=("parallel",),
            # TM=4096 fits every generation's default scoped VMEM; only bump
            # the limit if a caller pushes the tile beyond that.
            vmem_limit_bytes=(64 * 1024 * 1024 if tile > 4096 else None)),
    )(x2, w_in, b_in, w_h, b_h, w_out, b_out, mask_row)

    return out[0, :n].reshape(batch, num_tracks, 1)


def init_params(key, input_size=INPUT_SIZE, hidden_size=HIDDEN_SIZE,
                num_layers=NUM_LAYERS):
    """Xavier-uniform weights (PyTorch (out, in) orientation), zero biases --
    matches TrackMLPClassifier._initialize_weights. MXU weights stored bf16;
    biases and the output head stay f32 (VPU path)."""
    def xavier(k, fan_out, fan_in):
        bound = jnp.sqrt(6.0 / (fan_in + fan_out))
        return jax.random.uniform(k, (fan_out, fan_in), jnp.float32,
                                  minval=-bound, maxval=bound)

    keys = jax.random.split(key, num_layers + 2)
    w_in = xavier(keys[0], hidden_size, input_size).astype(jnp.bfloat16)
    b_in = jnp.zeros((hidden_size, 1), jnp.float32)
    w_h = jnp.stack([xavier(keys[1 + i], hidden_size, hidden_size)
                     for i in range(num_layers)], axis=0).astype(jnp.bfloat16)
    b_h = jnp.zeros((num_layers, hidden_size, 1), jnp.float32)
    w_out = xavier(keys[-1], 1, hidden_size).reshape(hidden_size, 1)  # f32 column
    b_out = jnp.zeros((1, 1), jnp.float32)
    return (w_in, b_in, w_h, b_h, w_out, b_out)


def _reference(x, params, mask=None):
    """Plain-JAX reference mirroring the PyTorch forward with the same
    bf16-operand / f32-accumulation scheme as the kernel."""
    w_in, b_in, w_h, b_h, w_out, b_out = params
    b, t, f = x.shape
    xb = x.reshape(-1, f).astype(jnp.bfloat16)                       # (N, F)
    h = lax.dot_general(w_in, xb, (((1,), (1,)), ((), ())),
                        preferred_element_type=jnp.float32)          # (H, N)
    h = _leaky_relu(h + b_in)
    for i in range(w_h.shape[0]):
        z = jnp.dot(w_h[i], h.astype(jnp.bfloat16),
                    preferred_element_type=jnp.float32)
        h = _leaky_relu(z + b_h[i]) + h
    y = (jnp.sum(h * w_out, axis=0, keepdims=True) + b_out)[0].reshape(b, t, 1)
    if mask is not None:
        y = y * mask[..., None]
    return y


if __name__ == "__main__":
    key = jax.random.PRNGKey(0)
    k_x, k_m, k_p, k_x2, k_m2 = jax.random.split(key, 5)

    params = init_params(k_p)

    # Small shape from the module spec: (batch, 4 tracks, 12 features).
    batch, num_tracks = 2, 4
    x = jax.random.normal(k_x, (batch, num_tracks, INPUT_SIZE), jnp.float32)
    mask = (jax.random.uniform(k_m, (batch, num_tracks)) > 0.3).astype(jnp.float32)

    out = jax.block_until_ready(track_mlp_classifier(x, params, mask))
    ref = _reference(x, params, mask)
    assert out.shape == (batch, num_tracks, 1)
    assert jnp.allclose(out, ref, atol=1e-3, rtol=1e-3), "mismatch (small)"

    # Larger shape (n=1200): adaptive tile path (1 or 2 steps depending on TC count).
    b2, t2 = 4, 300
    x2 = jax.random.normal(k_x2, (b2, t2, INPUT_SIZE), jnp.float32)
    mask2 = (jax.random.uniform(k_m2, (b2, t2)) > 0.5).astype(jnp.float32)
    out2 = jax.block_until_ready(track_mlp_classifier(x2, params, mask2))
    ref2 = _reference(x2, params, mask2)
    assert out2.shape == (b2, t2, 1)
    assert jnp.allclose(out2, ref2, atol=1e-3, rtol=1e-3), "mismatch (large)"

    # Force the multi-step grid + ragged tail-block path on any hardware.
    out3 = jax.block_until_ready(track_mlp_classifier(x2, params, mask2, tm=512))
    assert jnp.allclose(out3, ref2, atol=1e-3, rtol=1e-3), "mismatch (ragged/multi-step)"

    # Optional-mask path.
    out4 = jax.block_until_ready(track_mlp_classifier(x, params))
    ref4 = _reference(x, params)
    assert jnp.allclose(out4, ref4, atol=1e-3, rtol=1e-3), "mismatch (no mask)"

    print("KERNEL_OK")
</pallas_src>

<mosaic_0001>
module attributes {stable_mosaic.version = 11 : i64} {
  func.func @_mlp_kernel(%arg0: i32, %arg1: memref<8x12xbf16, #tpu.memory_space<vmem>>, %arg2: memref<128x12xbf16, #tpu.memory_space<vmem>>, %arg3: memref<128x1xf32, #tpu.memory_space<vmem>>, %arg4: memref<3x128x128xbf16, #tpu.memory_space<vmem>>, %arg5: memref<3x128x1xf32, #tpu.memory_space<vmem>>, %arg6: memref<128x1xf32, #tpu.memory_space<vmem>>, %arg7: memref<1x1xf32, #tpu.memory_space<vmem>>, %arg8: memref<1x8xf32, #tpu.memory_space<vmem>>, %arg9: memref<1x8xf32, #tpu.memory_space<vmem>>) attributes {dimension_semantics = [#tpu.dimension_semantics<parallel>], iteration_bounds = array<i64: 1>, scalar_prefetch = 0 : i64, scratch_operands = 0 : i64, tpu.core_type = #tpu.core_type<tc>, window_params = [{transform_indices = @transform_0, window_bounds = array<i64: 8, 12>}, {pipeline_mode = #tpu.pipeline_mode<synchronous>, transform_indices = @transform_1, window_bounds = array<i64: 128, 12>}, {pipeline_mode = #tpu.pipeline_mode<synchronous>, transform_indices = @transform_2, window_bounds = array<i64: 128, 1>}, {pipeline_mode = #tpu.pipeline_mode<synchronous>, transform_indices = @transform_3, window_bounds = array<i64: 3, 128, 128>}, {pipeline_mode = #tpu.pipeline_mode<synchronous>, transform_indices = @transform_4, window_bounds = array<i64: 3, 128, 1>}, {pipeline_mode = #tpu.pipeline_mode<synchronous>, transform_indices = @transform_5, window_bounds = array<i64: 128, 1>}, {pipeline_mode = #tpu.pipeline_mode<synchronous>, transform_indices = @transform_6, window_bounds = array<i64: 1, 1>}, {transform_indices = @transform_7, window_bounds = array<i64: 1, 8>}, {transform_indices = @transform_8, window_bounds = array<i64: 1, 8>}]} {
    %c0 = arith.constant 0 : index
    %c0_0 = arith.constant 0 : index
    %0 = vector.load %arg2[%c0, %c0_0] : memref<128x12xbf16, #tpu.memory_space<vmem>>, vector<128x12xbf16>
    %c0_1 = arith.constant 0 : index
    %c0_2 = arith.constant 0 : index
    %1 = vector.load %arg1[%c0_1, %c0_2] : memref<8x12xbf16, #tpu.memory_space<vmem>>, vector<8x12xbf16>
    %cst = arith.constant dense<0.000000e+00> : vector<128x8xf32>
    %2 = tpu.matmul %0, %1, %cst {dimension_numbers = #tpu.dot_dimension_numbers<[1], [1], [0], [0], [0, 0, 1, 0], [], []>} : vector<128x12xbf16>, vector<8x12xbf16>, vector<128x8xf32> -> vector<128x8xf32>
    %c0_3 = arith.constant 0 : index
    %c0_4 = arith.constant 0 : index
    %3 = vector.load %arg3[%c0_3, %c0_4] : memref<128x1xf32, #tpu.memory_space<vmem>>, vector<128x1xf32>
    %4 = vector.broadcast %3 : vector<128x1xf32> to vector<128x8xf32>
    %5 = arith.addf %2, %4 : vector<128x8xf32>
    %cst_5 = arith.constant 0.00999999977 : f32
    %6 = vector.broadcast %cst_5 : f32 to vector<128x8xf32>
    %7 = arith.mulf %6, %5 : vector<128x8xf32>
    %8 = arith.maximumf %5, %7 : vector<128x8xf32>
    %c0_6 = arith.constant 0 : index
    %c0_7 = arith.constant 0 : index
    %c0_8 = arith.constant 0 : index
    %9 = vector.load %arg4[%c0_6, %c0_7, %c0_8] : memref<3x128x128xbf16, #tpu.memory_space<vmem>>, vector<1x128x128xbf16>
    %10 = vector.shape_cast %9 : vector<1x128x128xbf16> to vector<128x128xbf16>
    %11 = arith.truncf %8 : vector<128x8xf32> to vector<128x8xbf16>
    %cst_9 = arith.constant dense<0.000000e+00> : vector<128x8xf32>
    %12 = tpu.matmul %10, %11, %cst_9 {dimension_numbers = #tpu.dot_dimension_numbers<[1], [0], [0], [1], [0, 0, 1, 1], [], []>} : vector<128x128xbf16>, vector<128x8xbf16>, vector<128x8xf32> -> vector<128x8xf32>
    %c0_10 = arith.constant 0 : index
    %c0_11 = arith.constant 0 : index
    %c0_12 = arith.constant 0 : index
    %13 = vector.load %arg5[%c0_10, %c0_11, %c0_12] : memref<3x128x1xf32, #tpu.memory_space<vmem>>, vector<1x128x1xf32>
    %14 = vector.shape_cast %13 : vector<1x128x1xf32> to vector<128x1xf32>
    %15 = vector.broadcast %14 : vector<128x1xf32> to vector<128x8xf32>
    %16 = arith.addf %12, %15 : vector<128x8xf32>
    %cst_13 = arith.constant 0.00999999977 : f32
    %17 = vector.broadcast %cst_13 : f32 to vector<128x8xf32>
    %18 = arith.mulf %17, %16 : vector<128x8xf32>
    %19 = arith.maximumf %16, %18 : vector<128x8xf32>
    %20 = arith.addf %19, %8 : vector<128x8xf32>
    %c1 = arith.constant 1 : index
    %c0_14 = arith.constant 0 : index
    %c0_15 = arith.constant 0 : index
    %21 = vector.load %arg4[%c1, %c0_14, %c0_15] : memref<3x128x128xbf16, #tpu.memory_space<vmem>>, vector<1x128x128xbf16>
    %22 = vector.shape_cast %21 : vector<1x128x128xbf16> to vector<128x128xbf16>
    %23 = arith.truncf %20 : vector<128x8xf32> to vector<128x8xbf16>
    %cst_16 = arith.constant dense<0.000000e+00> : vector<128x8xf32>
    %24 = tpu.matmul %22, %23, %cst_16 {dimension_numbers = #tpu.dot_dimension_numbers<[1], [0], [0], [1], [0, 0, 1, 1], [], []>} : vector<128x128xbf16>, vector<128x8xbf16>, vector<128x8xf32> -> vector<128x8xf32>
    %c1_17 = arith.constant 1 : index
    %c0_18 = arith.constant 0 : index
    %c0_19 = arith.constant 0 : index
    %25 = vector.load %arg5[%c1_17, %c0_18, %c0_19] : memref<3x128x1xf32, #tpu.memory_space<vmem>>, vector<1x128x1xf32>
    %26 = vector.shape_cast %25 : vector<1x128x1xf32> to vector<128x1xf32>
    %27 = vector.broadcast %26 : vector<128x1xf32> to vector<128x8xf32>
    %28 = arith.addf %24, %27 : vector<128x8xf32>
    %cst_20 = arith.constant 0.00999999977 : f32
    %29 = vector.broadcast %cst_20 : f32 to vector<128x8xf32>
    %30 = arith.mulf %29, %28 : vector<128x8xf32>
    %31 = arith.maximumf %28, %30 : vector<128x8xf32>
    %32 = arith.addf %31, %20 : vector<128x8xf32>
    %c2 = arith.constant 2 : index
    %c0_21 = arith.constant 0 : index
    %c0_22 = arith.constant 0 : index
    %33 = vector.load %arg4[%c2, %c0_21, %c0_22] : memref<3x128x128xbf16, #tpu.memory_space<vmem>>, vector<1x128x128xbf16>
    %34 = vector.shape_cast %33 : vector<1x128x128xbf16> to vector<128x128xbf16>
    %35 = arith.truncf %32 : vector<128x8xf32> to vector<128x8xbf16>
    %cst_23 = arith.constant dense<0.000000e+00> : vector<128x8xf32>
    %36 = tpu.matmul %34, %35, %cst_23 {dimension_numbers = #tpu.dot_dimension_numbers<[1], [0], [0], [1], [0, 0, 1, 1], [], []>} : vector<128x128xbf16>, vector<128x8xbf16>, vector<128x8xf32> -> vector<128x8xf32>
    %c2_24 = arith.constant 2 : index
    %c0_25 = arith.constant 0 : index
    %c0_26 = arith.constant 0 : index
    %37 = vector.load %arg5[%c2_24, %c0_25, %c0_26] : memref<3x128x1xf32, #tpu.memory_space<vmem>>, vector<1x128x1xf32>
    %38 = vector.shape_cast %37 : vector<1x128x1xf32> to vector<128x1xf32>
    %39 = vector.broadcast %38 : vector<128x1xf32> to vector<128x8xf32>
    %40 = arith.addf %36, %39 : vector<128x8xf32>
    %cst_27 = arith.constant 0.00999999977 : f32
    %41 = vector.broadcast %cst_27 : f32 to vector<128x8xf32>
    %42 = arith.mulf %41, %40 : vector<128x8xf32>
    %43 = arith.maximumf %40, %42 : vector<128x8xf32>
    %44 = arith.addf %43, %32 : vector<128x8xf32>
    %c0_28 = arith.constant 0 : index
    %c0_29 = arith.constant 0 : index
    %45 = vector.load %arg6[%c0_28, %c0_29] : memref<128x1xf32, #tpu.memory_space<vmem>>, vector<128x1xf32>
    %46 = vector.broadcast %45 : vector<128x1xf32> to vector<128x8xf32>
    %47 = arith.mulf %44, %46 : vector<128x8xf32>
    %cst_30 = arith.constant dense<0.000000e+00> : vector<8xf32>
    %48 = vector.multi_reduction <add>, %47, %cst_30 [0] : vector<128x8xf32> to vector<8xf32>
    %49 = vector.shape_cast %48 : vector<8xf32> to vector<1x8xf32>
    %c0_31 = arith.constant 0 : index
    %c0_32 = arith.constant 0 : index
    %50 = vector.load %arg7[%c0_31, %c0_32] : memref<1x1xf32, #tpu.memory_space<vmem>>, vector<1x1xf32>
    %51 = vector.broadcast %50 : vector<1x1xf32> to vector<1x8xf32>
    %52 = arith.addf %49, %51 : vector<1x8xf32>
    %c0_33 = arith.constant 0 : index
    %c0_34 = arith.constant 0 : index
    %53 = vector.load %arg8[%c0_33, %c0_34] : memref<1x8xf32, #tpu.memory_space<vmem>>, vector<1x8xf32>
    %54 = arith.mulf %52, %53 : vector<1x8xf32>
    %c0_35 = arith.constant 0 : index
    %c0_36 = arith.constant 0 : index
    %55 = vector.load %arg9[%c0_35, %c0_36] : memref<1x8xf32, #tpu.memory_space<vmem>>, vector<1x8xf32>
    tpu.vector_store %arg9[%c0_35, %c0_36], %54 {strides = array<i32>} : memref<1x8xf32, #tpu.memory_space<vmem>>, vector<1x8xf32>,
    return
  }
  func.func @transform_0(%arg0: i32) -> (i32, i32) {
    %c0_i32 = arith.constant 0 : i32
    %c0_i32_0 = arith.constant 0 : i32
    return %arg0, %c0_i32 : i32, i32
  }
  func.func @transform_1(%arg0: i32) -> (i32, i32) {
    %c0_i32 = arith.constant 0 : i32
    %c0_i32_0 = arith.constant 0 : i32
    %c0_i32_1 = arith.constant 0 : i32
    return %c0_i32, %c0_i32_0 : i32, i32
  }
  func.func @transform_2(%arg0: i32) -> (i32, i32) {
    %c0_i32 = arith.constant 0 : i32
    %c0_i32_0 = arith.constant 0 : i32
    %c0_i32_1 = arith.constant 0 : i32
    return %c0_i32, %c0_i32_0 : i32, i32
  }
  func.func @transform_3(%arg0: i32) -> (i32, i32, i32) {
    %c0_i32 = arith.constant 0 : i32
    %c0_i32_0 = arith.constant 0 : i32
    %c0_i32_1 = arith.constant 0 : i32
    %c0_i32_2 = arith.constant 0 : i32
    return %c0_i32, %c0_i32_0, %c0_i32_1 : i32, i32, i32
  }
  func.func @transform_4(%arg0: i32) -> (i32, i32, i32) {
    %c0_i32 = arith.constant 0 : i32
    %c0_i32_0 = arith.constant 0 : i32
    %c0_i32_1 = arith.constant 0 : i32
    %c0_i32_2 = arith.constant 0 : i32
    return %c0_i32, %c0_i32_0, %c0_i32_1 : i32, i32, i32
  }
  func.func @transform_5(%arg0: i32) -> (i32, i32) {
    %c0_i32 = arith.constant 0 : i32
    %c0_i32_0 = arith.constant 0 : i32
    %c0_i32_1 = arith.constant 0 : i32
    return %c0_i32, %c0_i32_0 : i32, i32
  }
  func.func @transform_6(%arg0: i32) -> (i32, i32) {
    %c0_i32 = arith.constant 0 : i32
    %c0_i32_0 = arith.constant 0 : i32
    %c0_i32_1 = arith.constant 0 : i32
    return %c0_i32, %c0_i32_0 : i32, i32
  }
  func.func @transform_7(%arg0: i32) -> (i32, i32) {
    %c0_i32 = arith.constant 0 : i32
    %c0_i32_0 = arith.constant 0 : i32
    return %c0_i32, %arg0 : i32, i32
  }
  func.func @transform_8(%arg0: i32) -> (i32, i32) {
    %c0_i32 = arith.constant 0 : i32
    %c0_i32_0 = arith.constant 0 : i32
    return %c0_i32, %arg0 : i32, i32
  }
}

</mosaic_0001>

<llo_original>
// kernel: tpu_custom_call.1
$region0: #{tpu_custom_call.1}
  #allocation0 [shape = 'u32[]', space=smem, size = 0x4, offset = 0x4, fixed_abs, tag = 'smem constant byte address 0x4 - core index']
  #allocation1 [shape = 'u32[144,128]{1,0:T(1,128)}', space=vmem, size = 0x12000, scoped, tag = 'internal scratch']
  #allocation2 [shape = 'f32[1,1]{1,0:T(1,128)S(1)}', space=vmem, size = 0x200, scoped, tag = 'scoped memory for tpu_custom_call.1']
  %s0 = inlined_call_operand.vmem [shape: bf16[8,12], index: 0, kind: input, shape index: {}]
  %s1 = inlined_call_operand.vmem [shape: bf16[128,12], index: 1, kind: input, shape index: {}]
  %s2 = inlined_call_operand.vmem [shape: f32[128,1], index: 2, kind: input, shape index: {}]
  %s3 = inlined_call_operand.vmem [shape: bf16[3,128,128], index: 3, kind: input, shape index: {}]
  %s4 = inlined_call_operand.vmem [shape: f32[3,128,1], index: 4, kind: input, shape index: {}]
  %s5 = inlined_call_operand.vmem [shape: f32[128,1], index: 5, kind: input, shape index: {}]
  %s6 = inlined_call_operand.<no memory space> [shape: f32[1,1], index: 6, kind: input, shape index: {}]
  %s7 = inlined_call_operand.vmem [shape: f32[1,8], index: 7, kind: input, shape index: {}]
  %s8 = inlined_call_operand.hbm [shape: f32[1,8], index: 8, kind: output, shape index: {}]
  %s9 = sld [smem:[#allocation0]]
  $region42: #{tpu_custom_call.1} parent=0
    _
  %s11 = ssub.s32 1, %s9
  %s12 = scalar_select 0, %s11, %s9
  %v13 = vstv %s6
  %14 = vst [vmem:[#allocation2] sm:$0x1] %v13
  $region1: #{tpu_custom_call.1} parent=0
    #allocation3 [shape = 'u8[512]{0}', space=vmem, size = 0x400, scoped, tag = 'output window, operand 0, single buffered']
    #allocation4 [shape = 's32[1]{0}', space=sflag, size = 0x4, scoped, tag = 'scoped memory for tpu_custom_call.1']
    %15 = vsyncpa [#allocation4], 0
    // Predicated region
    $region2: #{tpu_custom_call.1} parent=1 // pred_check
      _
    $region3: #{tpu_custom_call.1} parent=1 // pred_check_branch
      %17 = sbr.rel (0) target = $region5
    $region4: #{tpu_custom_call.1} parent=1 // pred_region
      _
    $region5: #{tpu_custom_call.1} parent=1 // pred_fallthru
      _
    // Predicated region
    $region6: #{tpu_custom_call.1} parent=1 // pred_check
      _
    $region7: #{tpu_custom_call.1} parent=1 // pred_check_branch
      %19 = sbr.rel (0) target = $region9
    $region8: #{tpu_custom_call.1} parent=1 // pred_region
      _
    $region9: #{tpu_custom_call.1} parent=1 // pred_fallthru
      _
    // Predicated region
    $region10: #{tpu_custom_call.1} parent=1 // pred_check
      _
    $region11: #{tpu_custom_call.1} parent=1 // pred_check_branch
      %21 = sbr.rel (0) target = $region13
    $region12: #{tpu_custom_call.1} parent=1 // pred_region
      _
    $region13: #{tpu_custom_call.1} parent=1 // pred_fallthru
      _
    // Predicated region
    $region14: #{tpu_custom_call.1} parent=1 // pred_check
      _
    $region15: #{tpu_custom_call.1} parent=1 // pred_check_branch
      %23 = sbr.rel (0) target = $region17
    $region16: #{tpu_custom_call.1} parent=1 // pred_region
      _
    $region17: #{tpu_custom_call.1} parent=1 // pred_fallthru
      _
    // Predicated region
    $region18: #{tpu_custom_call.1} parent=1 // pred_check
      _
    $region19: #{tpu_custom_call.1} parent=1 // pred_check_branch
      %25 = sbr.rel (0) target = $region21
    $region20: #{tpu_custom_call.1} parent=1 // pred_region
      _
    $region21: #{tpu_custom_call.1} parent=1 // pred_fallthru
      _
    // Predicated region
    $region22: #{tpu_custom_call.1} parent=1 // pred_check
      _
    $region23: #{tpu_custom_call.1} parent=1 // pred_check_branch
      %27 = sbr.rel (0) target = $region25
    $region24: #{tpu_custom_call.1} parent=1 // pred_region
      _
    $region25: #{tpu_custom_call.1} parent=1 // pred_fallthru
      _
    // Predicated region
    $region26: #{tpu_custom_call.1} parent=1 // pred_check
      _
    $region27: #{tpu_custom_call.1} parent=1 // pred_check_branch
      %29 = sbr.rel (0) target = $region29
    $region28: #{tpu_custom_call.1} parent=1 // pred_region
      _
    $region29: #{tpu_custom_call.1} parent=1 // pred_fallthru
      _
    // Predicated region
    $region30: #{tpu_custom_call.1} parent=1 // pred_check
      _
    $region31: #{tpu_custom_call.1} parent=1 // pred_check_branch
      %31 = sbr.rel (0) target = $region33
    $region32: #{tpu_custom_call.1} parent=1 // pred_region
      _
    $region33: #{tpu_custom_call.1} parent=1 // pred_fallthru
      _
    %v33 = vld [vmem:[%s1] sm:$0xf]
    %v34 = vld [vmem:[%s1 + $0x4] sm:$0xf]
    %v35 = vld [vmem:[%s1 + $0x8] sm:$0xf]
    %v36 = vld [vmem:[%s1 + $0xc] sm:$0xf]
    %v37 = vld [vmem:[%s1 + $0x10] sm:$0xf]
    %v38 = vld [vmem:[%s1 + $0x14] sm:$0xf]
    %v39 = vld [vmem:[%s1 + $0x18] sm:$0xf]
    %v40 = vld [vmem:[%s1 + $0x1c] sm:$0xf]
    %v41 = vld [vmem:[%s1 + $0x20] sm:$0xf]
    %v42 = vld [vmem:[%s1 + $0x24] sm:$0xf]
    %v43 = vld [vmem:[%s1 + $0x28] sm:$0xf]
    %v44 = vld [vmem:[%s1 + $0x2c] sm:$0xf]
    %v45 = vld [vmem:[%s1 + $0x30] sm:$0xf]
    %v46 = vld [vmem:[%s1 + $0x34] sm:$0xf]
    %v47 = vld [vmem:[%s1 + $0x38] sm:$0xf]
    %v48 = vld [vmem:[%s1 + $0x3c] sm:$0xf]
    %v49 = vld [vmem:[%s0] sm:$0xf]
    %v50 = vld [vmem:[%s2] sm:$0xff]
    %v51 = vld [vmem:[%s2 + $0x8] sm:$0xff]
    %v52 = vld [vmem:[%s2 + $0x10] sm:$0xff]
    %v53 = vld [vmem:[%s2 + $0x18] sm:$0xff]
    %v54 = vld [vmem:[%s2 + $0x20] sm:$0xff]
    %v55 = vld [vmem:[%s2 + $0x28] sm:$0xff]
    %v56 = vld [vmem:[%s2 + $0x30] sm:$0xff]
    %v57 = vld [vmem:[%s2 + $0x38] sm:$0xff]
    %v58 = vld [vmem:[%s2 + $0x40] sm:$0xff]
    %v59 = vld [vmem:[%s2 + $0x48] sm:$0xff]
    %v60 = vld [vmem:[%s2 + $0x50] sm:$0xff]
    %v61 = vld [vmem:[%s2 + $0x58] sm:$0xff]
    %v62 = vld [vmem:[%s2 + $0x60] sm:$0xff]
    %v63 = vld [vmem:[%s2 + $0x68] sm:$0xff]
    %v64 = vld [vmem:[%s2 + $0x70] sm:$0xff]
    %v65 = vld [vmem:[%s2 + $0x78] sm:$0xff]
    %67 = vset.pattern.permute.xlu0 0
    %68 = vperm.xlu0 %67, %v50
    %v69 = vpop.permute.xlu0 %68
    %72 = vset.pattern.permute.xlu0 0
    %73 = vperm.xlu0 %72, %v51
    %v74 = vpop.permute.xlu0 %73
    %77 = vset.pattern.permute.xlu0 0
    %78 = vperm.xlu0 %77, %v52
    %v79 = vpop.permute.xlu0 %78
    %82 = vset.pattern.permute.xlu0 0
    %83 = vperm.xlu0 %82, %v53
    %v84 = vpop.permute.xlu0 %83
    %87 = vset.pattern.permute.xlu0 0
    %88 = vperm.xlu0 %87, %v54
    %v89 = vpop.permute.xlu0 %88
    %92 = vset.pattern.permute.xlu0 0
    %93 = vperm.xlu0 %92, %v55
    %v94 = vpop.permute.xlu0 %93
    %97 = vset.pattern.permute.xlu0 0
    %98 = vperm.xlu0 %97, %v56
    %v99 = vpop.permute.xlu0 %98
    %102 = vset.pattern.permute.xlu0 0
    %103 = vperm.xlu0 %102, %v57
    %v104 = vpop.permute.xlu0 %103
    %107 = vset.pattern.permute.xlu0 0
    %108 = vperm.xlu0 %107, %v58
    %v109 = vpop.permute.xlu0 %108
    %112 = vset.pattern.permute.xlu0 0
    %113 = vperm.xlu0 %112, %v59
    %v114 = vpop.permute.xlu0 %113
    %117 = vset.pattern.permute.xlu0 0
    %118 = vperm.xlu0 %117, %v60
    %v119 = vpop.permute.xlu0 %118
    %122 = vset.pattern.permute.xlu0 0
    %123 = vperm.xlu0 %122, %v61
    %v124 = vpop.permute.xlu0 %123
    %127 = vset.pattern.permute.xlu0 0
    %128 = vperm.xlu0 %127, %v62
    %v129 = vpop.permute.xlu0 %128
    %132 = vset.pattern.permute.xlu0 0
    %133 = vperm.xlu0 %132, %v63
    %v134 = vpop.permute.xlu0 %133
    %137 = vset.pattern.permute.xlu0 0
    %138 = vperm.xlu0 %137, %v64
    %v139 = vpop.permute.xlu0 %138
    %142 = vset.pattern.permute.xlu0 0
    %143 = vperm.xlu0 %142, %v65
    %v144 = vpop.permute.xlu0 %143
    %v162 = vunpack.c.l.b16 %v33
    %v163 = vunpack.c.l.b16 %v34
    %v164 = vunpack.c.l.b16 %v35
    %v165 = vunpack.c.l.b16 %v36
    %v166 = vunpack.c.l.b16 %v37
    %v167 = vunpack.c.l.b16 %v38
    %v168 = vunpack.c.l.b16 %v39
    %v169 = vunpack.c.l.b16 %v40
    %v170 = vunpack.c.l.b16 %v41
    %v171 = vunpack.c.l.b16 %v42
    %v172 = vunpack.c.l.b16 %v43
    %v173 = vunpack.c.l.b16 %v44
    %v174 = vunpack.c.l.b16 %v45
    %v175 = vunpack.c.l.b16 %v46
    %v176 = vunpack.c.l.b16 %v47
    %v177 = vunpack.c.l.b16 %v48
    %v178 = vpack.c.b16 %v163, %v162
    %v179 = vpack.c.b16 %v165, %v164
    %v180 = vpack.c.b16 %v167, %v166
    %v181 = vpack.c.b16 %v169, %v168
    %v182 = vpack.c.b16 %v171, %v170
    %v183 = vpack.c.b16 %v173, %v172
    %v184 = vpack.c.b16 %v175, %v174
    %v185 = vpack.c.b16 %v177, %v176
    %vm186 = vcmask 97280
    %v188 = vsel %vm186, %v178, 0
    %v191 = vsel %vm186, %v179, 0
    %v194 = vsel %vm186, %v180, 0
    %v197 = vsel %vm186, %v181, 0
    %v200 = vsel %vm186, %v182, 0
    %v203 = vsel %vm186, %v183, 0
    %v206 = vsel %vm186, %v184, 0
    %v209 = vsel %vm186, %v185, 0
    %v212 = vsel %vm186, %v49, 0
    %214 = vmatprep.subr.bf16.mxu0 0
    %215 = vmatpush1.bf16.xpose.msra.mxu0 0
    %216 = vmatprep.subr.bf16.mxu0 0
    %217 = vmatpush1.bf16.xpose.msra.mxu0 0
    %218 = vmatprep.subr.bf16.mxu0 0
    %219 = vmatpush1.bf16.xpose.msra.mxu0 0
    %220 = vmatprep.subr.bf16.mxu0 0
    %221 = vmatpush1.bf16.xpose.msra.mxu0 0
    %222 = vmatprep.subr.bf16.mxu0 0
    %223 = vmatpush1.bf16.xpose.msra.mxu0 0
    %224 = vmatprep.subr.bf16.mxu0 0
    %225 = vmatpush1.bf16.xpose.msra.mxu0 0
    %226 = vmatprep.subr.bf16.mxu0 0
    %227 = vmatpush1.bf16.xpose.msra.mxu0 0
    %228 = vmatprep.subr.bf16.mxu0 0
    %229 = vmatpush1.bf16.xpose.msra.mxu0 %v212
    %230 = vmatprep.subr.bf16.mxu0 0
    %231 = vmatpush2.bf16.xpose.msra.mxu0 0
    %232 = vmatprep.subr.bf16.mxu0 0
    %233 = vmatpush2.bf16.xpose.msra.mxu0 0
    %234 = vmatprep.subr.bf16.mxu0 0
    %235 = vmatpush2.bf16.xpose.msra.mxu0 0
    %236 = vmatprep.subr.bf16.mxu0 0
    %237 = vmatpush2.bf16.xpose.msra.mxu0 0
    %238 = vmatprep.subr.bf16.mxu0 0
    %239 = vmatpush2.bf16.xpose.msra.mxu0 0
    %240 = vmatprep.subr.bf16.mxu0 0
    %241 = vmatpush2.bf16.xpose.msra.mxu0 0
    %242 = vmatprep.subr.bf16.mxu0 0
    %243 = vmatpush2.bf16.xpose.msra.mxu0 0
    %244 = vmatprep.subr.bf16.mxu0 0
    %245 = vmatpush2.bf16.xpose.msra.mxu0 0
    %246 = vmatprep.mubr.bf16.mxu0 0
    %247 = vmatmul.mubr.bf16.gmra.mxu0 %v188
    %v248 = vpop.f32.mrf.mxu0
    %v249 = vadd.f32 %v69, %v248
    %v250 = vpop.f32.mrf.mxu0
    %v251 = vpop.f32.mrf.mxu0
    %v252 = vadd.f32 %v74, %v251
    %v253 = vpop.f32.mrf.mxu0
    %254 = vmatprep.mubr.bf16.mxu0 0
    %255 = vmatmul.mubr.bf16.gmra.mxu0 %v191
    %v256 = vpop.f32.mrf.mxu0
    %v257 = vadd.f32 %v79, %v256
    %v258 = vpop.f32.mrf.mxu0
    %v259 = vpop.f32.mrf.mxu0
    %v260 = vadd.f32 %v84, %v259
    %v261 = vpop.f32.mrf.mxu0
    %262 = vmatprep.mubr.bf16.mxu0 0
    %263 = vmatmul.mubr.bf16.gmra.mxu0 %v194
    %v264 = vpop.f32.mrf.mxu0
    %v265 = vadd.f32 %v89, %v264
    %v266 = vpop.f32.mrf.mxu0
    %v267 = vpop.f32.mrf.mxu0
    %v268 = vadd.f32 %v94, %v267
    %v269 = vpop.f32.mrf.mxu0
    %270 = vmatprep.mubr.bf16.mxu0 0
    %271 = vmatmul.mubr.bf16.gmra.mxu0 %v197
    %v272 = vpop.f32.mrf.mxu0
    %v273 = vadd.f32 %v99, %v272
    %v274 = vpop.f32.mrf.mxu0
    %v275 = vpop.f32.mrf.mxu0
    %v276 = vadd.f32 %v104, %v275
    %v277 = vpop.f32.mrf.mxu0
    %278 = vmatprep.mubr.bf16.mxu0 0
    %279 = vmatmul.mubr.bf16.gmra.mxu0 %v200
    %v280 = vpop.f32.mrf.mxu0
    %v281 = vadd.f32 %v109, %v280
    %v282 = vpop.f32.mrf.mxu0
    %v283 = vpop.f32.mrf.mxu0
    %v284 = vadd.f32 %v114, %v283
    %v285 = vpop.f32.mrf.mxu0
    %286 = vmatprep.mubr.bf16.mxu0 0
    %287 = vmatmul.mubr.bf16.gmra.mxu0 %v203
    %v288 = vpop.f32.mrf.mxu0
    %v289 = vadd.f32 %v119, %v288
    %v290 = vpop.f32.mrf.mxu0
    %v291 = vpop.f32.mrf.mxu0
    %v292 = vadd.f32 %v124, %v291
    %v293 = vpop.f32.mrf.mxu0
    %294 = vmatprep.mubr.bf16.mxu0 0
    %295 = vmatmul.mubr.bf16.gmra.mxu0 %v206
    %v296 = vpop.f32.mrf.mxu0
    %v297 = vadd.f32 %v129, %v296
    %v298 = vpop.f32.mrf.mxu0
    %v299 = vpop.f32.mrf.mxu0
    %v300 = vadd.f32 %v134, %v299
    %v301 = vpop.f32.mrf.mxu0
    %302 = vmatprep.mubr.bf16.mxu0 0
    %303 = vmatmul.mubr.bf16.gmra.mxu0 %v209
    %v304 = vpop.f32.mrf.mxu0
    %v305 = vadd.f32 %v139, %v304
    %v306 = vpop.f32.mrf.mxu0
    %v307 = vpop.f32.mrf.mxu0
    %v308 = vadd.f32 %v144, %v307
    %v309 = vpop.f32.mrf.mxu0
    %310 = vdwg.mxu0
    %v311 = vmul.f32 %v249, 0.01
    %v312 = vmul.f32 %v252, 0.01
    %v313 = vmul.f32 %v257, 0.01
    %v314 = vmul.f32 %v260, 0.01
    %v315 = vmul.f32 %v265, 0.01
    %v316 = vmul.f32 %v268, 0.01
    %v317 = vmul.f32 %v273, 0.01
    %v318 = vmul.f32 %v276, 0.01
    %v319 = vmul.f32 %v281, 0.01
    %v320 = vmul.f32 %v284, 0.01
    %v321 = vmul.f32 %v289, 0.01
    %v322 = vmul.f32 %v292, 0.01
    %v323 = vmul.f32 %v297, 0.01
    %v324 = vmul.f32 %v300, 0.01
    %v325 = vmul.f32 %v305, 0.01
    %v326 = vmul.f32 %v308, 0.01
    %v327 = vmax.f32 %v249, %v311
    %v328 = vmax.f32 %v252, %v312
    %v329 = vmax.f32 %v257, %v313
    %v330 = vmax.f32 %v260, %v314
    %v331 = vmax.f32 %v265, %v315
    %v332 = vmax.f32 %v268, %v316
    %v333 = vmax.f32 %v273, %v317
    %v334 = vmax.f32 %v276, %v318
    %v335 = vmax.f32 %v281, %v319
    %v336 = vmax.f32 %v284, %v320
    %v337 = vmax.f32 %v289, %v321
    %v338 = vmax.f32 %v292, %v322
    %v339 = vmax.f32 %v297, %v323
    %v340 = vmax.f32 %v300, %v324
    %v341 = vmax.f32 %v305, %v325
    %v342 = vmax.f32 %v308, %v326
    %v343 = vld [vmem:[%s3] sm:$0xf]
    %v344 = vld [vmem:[%s3 + $0x4] sm:$0xf]
    %v345 = vld [vmem:[%s3 + $0x8] sm:$0xf]
    %v346 = vld [vmem:[%s3 + $0xc] sm:$0xf]
    %v347 = vld [vmem:[%s3 + $0x10] sm:$0xf]
    %v348 = vld [vmem:[%s3 + $0x14] sm:$0xf]
    %v349 = vld [vmem:[%s3 + $0x18] sm:$0xf]
    %v350 = vld [vmem:[%s3 + $0x1c] sm:$0xf]
    %v351 = vld [vmem:[%s3 + $0x20] sm:$0xf]
    %v352 = vld [vmem:[%s3 + $0x24] sm:$0xf]
    %v353 = vld [vmem:[%s3 + $0x28] sm:$0xf]
    %v354 = vld [vmem:[%s3 + $0x2c] sm:$0xf]
    %v355 = vld [vmem:[%s3 + $0x30] sm:$0xf]
    %v356 = vld [vmem:[%s3 + $0x34] sm:$0xf]
    %v357 = vld [vmem:[%s3 + $0x38] sm:$0xf]
    %v358 = vld [vmem:[%s3 + $0x3c] sm:$0xf]
    %v359 = vpack.c.bf16 %v328, %v327
    %v360 = vpack.c.bf16 %v330, %v329
    %v361 = vpack.c.bf16 %v332, %v331
    %v362 = vpack.c.bf16 %v334, %v333
    %v363 = vpack.c.bf16 %v336, %v335
    %v364 = vpack.c.bf16 %v338, %v337
    %v365 = vpack.c.bf16 %v340, %v339
    %v366 = vpack.c.bf16 %v342, %v341
    %v367 = vld [vmem:[%s4] sm:$0xff]
    %v368 = vld [vmem:[%s4 + $0x8] sm:$0xff]
    %v369 = vld [vmem:[%s4 + $0x10] sm:$0xff]
    %v370 = vld [vmem:[%s4 + $0x18] sm:$0xff]
    %v371 = vld [vmem:[%s4 + $0x20] sm:$0xff]
    %v372 = vld [vmem:[%s4 + $0x28] sm:$0xff]
    %v373 = vld [vmem:[%s4 + $0x30] sm:$0xff]
    %v374 = vld [vmem:[%s4 + $0x38] sm:$0xff]
    %v375 = vld [vmem:[%s4 + $0x40] sm:$0xff]
    %v376 = vld [vmem:[%s4 + $0x48] sm:$0xff]
    %v377 = vld [vmem:[%s4 + $0x50] sm:$0xff]
    %v378 = vld [vmem:[%s4 + $0x58] sm:$0xff]
    %v379 = vld [vmem:[%s4 + $0x60] sm:$0xff]
    %v380 = vld [vmem:[%s4 + $0x68] sm:$0xff]
    %v381 = vld [vmem:[%s4 + $0x70] sm:$0xff]
    %v382 = vld [vmem:[%s4 + $0x78] sm:$0xff]
    %384 = vset.pattern.permute.xlu0 0
    %385 = vperm.xlu0 %384, %v367
    %v386 = vpop.permute.xlu0 %385
    %389 = vset.pattern.permute.xlu0 0
    %390 = vperm.xlu0 %389, %v368
    %v391 = vpop.permute.xlu0 %390
    %394 = vset.pattern.permute.xlu0 0
    %395 = vperm.xlu0 %394, %v369
    %v396 = vpop.permute.xlu0 %395
    %399 = vset.pattern.permute.xlu0 0
    %400 = vperm.xlu0 %399, %v370
    %v401 = vpop.permute.xlu0 %400
    %404 = vset.pattern.permute.xlu0 0
    %405 = vperm.xlu0 %404, %v371
    %v406 = vpop.permute.xlu0 %405
    %409 = vset.pattern.permute.xlu0 0
    %410 = vperm.xlu0 %409, %v372
    %v411 = vpop.permute.xlu0 %410
    %414 = vset.pattern.permute.xlu0 0
    %415 = vperm.xlu0 %414, %v373
    %v416 = vpop.permute.xlu0 %415
    %419 = vset.pattern.permute.xlu0 0
    %420 = vperm.xlu0 %419, %v374
    %v421 = vpop.permute.xlu0 %420
    %424 = vset.pattern.permute.xlu0 0
    %425 = vperm.xlu0 %424, %v375
    %v426 = vpop.permute.xlu0 %425
    %429 = vset.pattern.permute.xlu0 0
    %430 = vperm.xlu0 %429, %v376
    %v431 = vpop.permute.xlu0 %430
    %434 = vset.pattern.permute.xlu0 0
    %435 = vperm.xlu0 %434, %v377
    %v436 = vpop.permute.xlu0 %435
    %439 = vset.pattern.permute.xlu0 0
    %440 = vperm.xlu0 %439, %v378
    %v441 = vpop.permute.xlu0 %440
    %444 = vset.pattern.permute.xlu0 0
    %445 = vperm.xlu0 %444, %v379
    %v446 = vpop.permute.xlu0 %445
    %449 = vset.pattern.permute.xlu0 0
    %450 = vperm.xlu0 %449, %v380
    %v451 = vpop.permute.xlu0 %450
    %454 = vset.pattern.permute.xlu0 0
    %455 = vperm.xlu0 %454, %v381
    %v456 = vpop.permute.xlu0 %455
    %459 = vset.pattern.permute.xlu0 0
    %460 = vperm.xlu0 %459, %v382
    %v461 = vpop.permute.xlu0 %460
    %v479 = vunpack.c.l.b16 %v343
    %v480 = vunpack.c.l.b16 %v344
    %v481 = vunpack.c.l.b16 %v345
    %v482 = vunpack.c.l.b16 %v346
    %v483 = vunpack.c.l.b16 %v347
    %v484 = vunpack.c.l.b16 %v348
    %v485 = vunpack.c.l.b16 %v349
    %v486 = vunpack.c.l.b16 %v350
    %v487 = vunpack.c.l.b16 %v351
    %v488 = vunpack.c.l.b16 %v352
    %v489 = vunpack.c.l.b16 %v353
    %v490 = vunpack.c.l.b16 %v354
    %v491 = vunpack.c.l.b16 %v355
    %v492 = vunpack.c.l.b16 %v356
    %v493 = vunpack.c.l.b16 %v357
    %v494 = vunpack.c.l.b16 %v358
    %v495 = vpack.c.b16 %v480, %v479
    %v496 = vpack.c.b16 %v482, %v481
    %v497 = vpack.c.b16 %v484, %v483
    %v498 = vpack.c.b16 %v486, %v485
    %v499 = vpack.c.b16 %v488, %v487
    %v500 = vpack.c.b16 %v490, %v489
    %v501 = vpack.c.b16 %v492, %v491
    %v502 = vpack.c.b16 %v494, %v493
    %511 = vmatprep.subr.bf16.mxu0 0
    %512 = vmatpush1.bf16.msra.mxu0 %v366
    %513 = vmatprep.subr.bf16.mxu0 0
    %514 = vmatpush1.bf16.msra.mxu0 %v365
    %515 = vmatprep.subr.bf16.mxu0 0
    %516 = vmatpush1.bf16.msra.mxu0 %v364
    %517 = vmatprep.subr.bf16.mxu0 0
    %518 = vmatpush1.bf16.msra.mxu0 %v363
    %519 = vmatprep.subr.bf16.mxu0 0
    %520 = vmatpush1.bf16.msra.mxu0 %v362
    %521 = vmatprep.subr.bf16.mxu0 0
    %522 = vmatpush1.bf16.msra.mxu0 %v361
    %523 = vmatprep.subr.bf16.mxu0 0
    %524 = vmatpush1.bf16.msra.mxu0 %v360
    %525 = vmatprep.subr.bf16.mxu0 0
    %526 = vmatpush1.bf16.msra.mxu0 %v359
    %527 = vmatprep.subr.bf16.mxu0 0
    %528 = vmatpush2.bf16.msra.mxu0 0
    %529 = vmatprep.subr.bf16.mxu0 0
    %530 = vmatpush2.bf16.msra.mxu0 0
    %531 = vmatprep.subr.bf16.mxu0 0
    %532 = vmatpush2.bf16.msra.mxu0 0
    %533 = vmatprep.subr.bf16.mxu0 0
    %534 = vmatpush2.bf16.msra.mxu0 0
    %535 = vmatprep.subr.bf16.mxu0 0
    %536 = vmatpush2.bf16.msra.mxu0 0
    %537 = vmatprep.subr.bf16.mxu0 0
    %538 = vmatpush2.bf16.msra.mxu0 0
    %539 = vmatprep.subr.bf16.mxu0 0
    %540 = vmatpush2.bf16.msra.mxu0 0
    %541 = vmatprep.subr.bf16.mxu0 0
    %542 = vmatpush2.bf16.msra.mxu0 0
    %543 = vmatprep.mubr.bf16.mxu0 0
    %544 = vmatmul.mubr.bf16.gmra.mxu0 %v495
    %v545 = vpop.f32.mrf.mxu0
    %v546 = vadd.f32 %v386, %v545
    %v547 = vpop.f32.mrf.mxu0
    %v548 = vpop.f32.mrf.mxu0
    %v549 = vadd.f32 %v391, %v548
    %v550 = vpop.f32.mrf.mxu0
    %551 = vmatprep.mubr.bf16.mxu0 0
    %552 = vmatmul.mubr.bf16.gmra.mxu0 %v496
    %v553 = vpop.f32.mrf.mxu0
    %v554 = vadd.f32 %v396, %v553
    %v555 = vpop.f32.mrf.mxu0
    %v556 = vpop.f32.mrf.mxu0
    %v557 = vadd.f32 %v401, %v556
    %v558 = vpop.f32.mrf.mxu0
    %559 = vmatprep.mubr.bf16.mxu0 0
    %560 = vmatmul.mubr.bf16.gmra.mxu0 %v497
    %v561 = vpop.f32.mrf.mxu0
    %v562 = vadd.f32 %v406, %v561
    %v563 = vpop.f32.mrf.mxu0
    %v564 = vpop.f32.mrf.mxu0
    %v565 = vadd.f32 %v411, %v564
    %v566 = vpop.f32.mrf.mxu0
    %567 = vmatprep.mubr.bf16.mxu0 0
    %568 = vmatmul.mubr.bf16.gmra.mxu0 %v498
    %v569 = vpop.f32.mrf.mxu0
    %v570 = vadd.f32 %v416, %v569
    %v571 = vpop.f32.mrf.mxu0
    %v572 = vpop.f32.mrf.mxu0
    %v573 = vadd.f32 %v421, %v572
    %v574 = vpop.f32.mrf.mxu0
    %575 = vmatprep.mubr.bf16.mxu0 0
    %576 = vmatmul.mubr.bf16.gmra.mxu0 %v499
    %v577 = vpop.f32.mrf.mxu0
    %v578 = vadd.f32 %v426, %v577
    %v579 = vpop.f32.mrf.mxu0
    %v580 = vpop.f32.mrf.mxu0
    %v581 = vadd.f32 %v431, %v580
    %v582 = vpop.f32.mrf.mxu0
    %583 = vmatprep.mubr.bf16.mxu0 0
    %584 = vmatmul.mubr.bf16.gmra.mxu0 %v500
    %v585 = vpop.f32.mrf.mxu0
    %v586 = vadd.f32 %v436, %v585
    %v587 = vpop.f32.mrf.mxu0
    %v588 = vpop.f32.mrf.mxu0
    %v589 = vadd.f32 %v441, %v588
    %v590 = vpop.f32.mrf.mxu0
    %591 = vmatprep.mubr.bf16.mxu0 0
    %592 = vmatmul.mubr.bf16.gmra.mxu0 %v501
    %v593 = vpop.f32.mrf.mxu0
    %v594 = vadd.f32 %v446, %v593
    %v595 = vpop.f32.mrf.mxu0
    %v596 = vpop.f32.mrf.mxu0
    %v597 = vadd.f32 %v451, %v596
    %v598 = vpop.f32.mrf.mxu0
    %599 = vmatprep.mubr.bf16.mxu0 0
    %600 = vmatmul.mubr.bf16.gmra.mxu0 %v502
    %v601 = vpop.f32.mrf.mxu0
    %v602 = vadd.f32 %v456, %v601
    %v603 = vpop.f32.mrf.mxu0
    %v604 = vpop.f32.mrf.mxu0
    %v605 = vadd.f32 %v461, %v604
    %v606 = vpop.f32.mrf.mxu0
    %607 = vdwg.mxu0
    %v608 = vmul.f32 %v546, 0.01
    %v609 = vmul.f32 %v549, 0.01
    %v610 = vmul.f32 %v554, 0.01
    %v611 = vmul.f32 %v557, 0.01
    %v612 = vmul.f32 %v562, 0.01
    %v613 = vmul.f32 %v565, 0.01
    %v614 = vmul.f32 %v570, 0.01
    %v615 = vmul.f32 %v573, 0.01
    %v616 = vmul.f32 %v578, 0.01
    %v617 = vmul.f32 %v581, 0.01
    %v618 = vmul.f32 %v586, 0.01
    %v619 = vmul.f32 %v589, 0.01
    %v620 = vmul.f32 %v594, 0.01
    %v621 = vmul.f32 %v597, 0.01
    %v622 = vmul.f32 %v602, 0.01
    %v623 = vmul.f32 %v605, 0.01
    %v624 = vmax.f32 %v546, %v608
    %v625 = vmax.f32 %v549, %v609
    %v626 = vmax.f32 %v554, %v610
    %v627 = vmax.f32 %v557, %v611
    %v628 = vmax.f32 %v562, %v612
    %v629 = vmax.f32 %v565, %v613
    %v630 = vmax.f32 %v570, %v614
    %v631 = vmax.f32 %v573, %v615
    %v632 = vmax.f32 %v578, %v616
    %v633 = vmax.f32 %v581, %v617
    %v634 = vmax.f32 %v586, %v618
    %v635 = vmax.f32 %v589, %v619
    %v636 = vmax.f32 %v594, %v620
    %v637 = vmax.f32 %v597, %v621
    %v638 = vmax.f32 %v602, %v622
    %v639 = vmax.f32 %v605, %v623
    %v640 = vadd.f32 %v624, %v327
    %v641 = vadd.f32 %v625, %v328
    %v642 = vadd.f32 %v626, %v329
    %v643 = vadd.f32 %v627, %v330
    %v644 = vadd.f32 %v628, %v331
    %v645 = vadd.f32 %v629, %v332
    %v646 = vadd.f32 %v630, %v333
    %v647 = vadd.f32 %v631, %v334
    %v648 = vadd.f32 %v632, %v335
    %v649 = vadd.f32 %v633, %v336
    %v650 = vadd.f32 %v634, %v337
    %v651 = vadd.f32 %v635, %v338
    %v652 = vadd.f32 %v636, %v339
    %v653 = vadd.f32 %v637, %v340
    %v654 = vadd.f32 %v638, %v341
    %v655 = vadd.f32 %v639, %v342
    %s656 = scalar_lea.vmem %s3, 64
    %v657 = vld [vmem:[%s656] sm:$0xf]
    %v658 = vld [vmem:[%s656 + $0x4] sm:$0xf]
    %v659 = vld [vmem:[%s656 + $0x8] sm:$0xf]
    %v660 = vld [vmem:[%s656 + $0xc] sm:$0xf]
    %v661 = vld [vmem:[%s656 + $0x10] sm:$0xf]
    %v662 = vld [vmem:[%s656 + $0x14] sm:$0xf]
    %v663 = vld [vmem:[%s656 + $0x18] sm:$0xf]
    %v664 = vld [vmem:[%s656 + $0x1c] sm:$0xf]
    %v665 = vld [vmem:[%s656 + $0x20] sm:$0xf]
    %v666 = vld [vmem:[%s656 + $0x24] sm:$0xf]
    %v667 = vld [vmem:[%s656 + $0x28] sm:$0xf]
    %v668 = vld [vmem:[%s656 + $0x2c] sm:$0xf]
    %v669 = vld [vmem:[%s656 + $0x30] sm:$0xf]
    %v670 = vld [vmem:[%s656 + $0x34] sm:$0xf]
    %v671 = vld [vmem:[%s656 + $0x38] sm:$0xf]
    %v672 = vld [vmem:[%s656 + $0x3c] sm:$0xf]
    %v673 = vpack.c.bf16 %v641, %v640
    %v674 = vpack.c.bf16 %v643, %v642
    %v675 = vpack.c.bf16 %v645, %v644
    %v676 = vpack.c.bf16 %v647, %v646
    %v677 = vpack.c.bf16 %v649, %v648
    %v678 = vpack.c.bf16 %v651, %v650
    %v679 = vpack.c.bf16 %v653, %v652
    %v680 = vpack.c.bf16 %v655, %v654
    %s681 = scalar_lea.vmem %s4, 128
    %v682 = vld [vmem:[%s681] sm:$0xff]
    %v683 = vld [vmem:[%s681 + $0x8] sm:$0xff]
    %v684 = vld [vmem:[%s681 + $0x10] sm:$0xff]
    %v685 = vld [vmem:[%s681 + $0x18] sm:$0xff]
    %v686 = vld [vmem:[%s681 + $0x20] sm:$0xff]
    %v687 = vld [vmem:[%s681 + $0x28] sm:$0xff]
    %v688 = vld [vmem:[%s681 + $0x30] sm:$0xff]
    %v689 = vld [vmem:[%s681 + $0x38] sm:$0xff]
    %v690 = vld [vmem:[%s681 + $0x40] sm:$0xff]
    %v691 = vld [vmem:[%s681 + $0x48] sm:$0xff]
    %v692 = vld [vmem:[%s681 + $0x50] sm:$0xff]
    %v693 = vld [vmem:[%s681 + $0x58] sm:$0xff]
    %v694 = vld [vmem:[%s681 + $0x60] sm:$0xff]
    %v695 = vld [vmem:[%s681 + $0x68] sm:$0xff]
    %v696 = vld [vmem:[%s681 + $0x70] sm:$0xff]
    %v697 = vld [vmem:[%s681 + $0x78] sm:$0xff]
    %699 = vset.pattern.permute.xlu0 0
    %700 = vperm.xlu0 %699, %v682
    %v701 = vpop.permute.xlu0 %700
    %704 = vset.pattern.permute.xlu0 0
    %705 = vperm.xlu0 %704, %v683
    %v706 = vpop.permute.xlu0 %705
    %709 = vset.pattern.permute.xlu0 0
    %710 = vperm.xlu0 %709, %v684
    %v711 = vpop.permute.xlu0 %710
    %714 = vset.pattern.permute.xlu0 0
    %715 = vperm.xlu0 %714, %v685
    %v716 = vpop.permute.xlu0 %715
    %719 = vset.pattern.permute.xlu0 0
    %720 = vperm.xlu0 %719, %v686
    %v721 = vpop.permute.xlu0 %720
    %724 = vset.pattern.permute.xlu0 0
    %725 = vperm.xlu0 %724, %v687
    %v726 = vpop.permute.xlu0 %725
    %729 = vset.pattern.permute.xlu0 0
    %730 = vperm.xlu0 %729, %v688
    %v731 = vpop.permute.xlu0 %730
    %734 = vset.pattern.permute.xlu0 0
    %735 = vperm.xlu0 %734, %v689
    %v736 = vpop.permute.xlu0 %735
    %739 = vset.pattern.permute.xlu0 0
    %740 = vperm.xlu0 %739, %v690
    %v741 = vpop.permute.xlu0 %740
    %744 = vset.pattern.permute.xlu0 0
    %745 = vperm.xlu0 %744, %v691
    %v746 = vpop.permute.xlu0 %745
    %749 = vset.pattern.permute.xlu0 0
    %750 = vperm.xlu0 %749, %v692
    %v751 = vpop.permute.xlu0 %750
    %754 = vset.pattern.permute.xlu0 0
    %755 = vperm.xlu0 %754, %v693
    %v756 = vpop.permute.xlu0 %755
    %759 = vset.pattern.permute.xlu0 0
    %760 = vperm.xlu0 %759, %v694
    %v761 = vpop.permute.xlu0 %760
    %764 = vset.pattern.permute.xlu0 0
    %765 = vperm.xlu0 %764, %v695
    %v766 = vpop.permute.xlu0 %765
    %769 = vset.pattern.permute.xlu0 0
    %770 = vperm.xlu0 %769, %v696
    %v771 = vpop.permute.xlu0 %770
    %774 = vset.pattern.permute.xlu0 0
    %775 = vperm.xlu0 %774, %v697
    %v776 = vpop.permute.xlu0 %775
    %v794 = vunpack.c.l.b16 %v657
    %v795 = vunpack.c.l.b16 %v658
    %v796 = vunpack.c.l.b16 %v659
    %v797 = vunpack.c.l.b16 %v660
    %v798 = vunpack.c.l.b16 %v661
    %v799 = vunpack.c.l.b16 %v662
    %v800 = vunpack.c.l.b16 %v663
    %v801 = vunpack.c.l.b16 %v664
    %v802 = vunpack.c.l.b16 %v665
    %v803 = vunpack.c.l.b16 %v666
    %v804 = vunpack.c.l.b16 %v667
    %v805 = vunpack.c.l.b16 %v668
    %v806 = vunpack.c.l.b16 %v669
    %v807 = vunpack.c.l.b16 %v670
    %v808 = vunpack.c.l.b16 %v671
    %v809 = vunpack.c.l.b16 %v672
    %v810 = vpack.c.b16 %v795, %v794
    %v811 = vpack.c.b16 %v797, %v796
    %v812 = vpack.c.b16 %v799, %v798
    %v813 = vpack.c.b16 %v801, %v800
    %v814 = vpack.c.b16 %v803, %v802
    %v815 = vpack.c.b16 %v805, %v804
    %v816 = vpack.c.b16 %v807, %v806
    %v817 = vpack.c.b16 %v809, %v808
    %826 = vmatprep.subr.bf16.mxu0 0
    %827 = vmatpush1.bf16.msra.mxu0 %v680
    %828 = vmatprep.subr.bf16.mxu0 0
    %829 = vmatpush1.bf16.msra.mxu0 %v679
    %830 = vmatprep.subr.bf16.mxu0 0
    %831 = vmatpush1.bf16.msra.mxu0 %v678
    %832 = vmatprep.subr.bf16.mxu0 0
    %833 = vmatpush1.bf16.msra.mxu0 %v677
    %834 = vmatprep.subr.bf16.mxu0 0
    %835 = vmatpush1.bf16.msra.mxu0 %v676
    %836 = vmatprep.subr.bf16.mxu0 0
    %837 = vmatpush1.bf16.msra.mxu0 %v675
    %838 = vmatprep.subr.bf16.mxu0 0
    %839 = vmatpush1.bf16.msra.mxu0 %v674
    %840 = vmatprep.subr.bf16.mxu0 0
    %841 = vmatpush1.bf16.msra.mxu0 %v673
    %842 = vmatprep.subr.bf16.mxu0 0
    %843 = vmatpush2.bf16.msra.mxu0 0
    %844 = vmatprep.subr.bf16.mxu0 0
    %845 = vmatpush2.bf16.msra.mxu0 0
    %846 = vmatprep.subr.bf16.mxu0 0
    %847 = vmatpush2.bf16.msra.mxu0 0
    %848 = vmatprep.subr.bf16.mxu0 0
    %849 = vmatpush2.bf16.msra.mxu0 0
    %850 = vmatprep.subr.bf16.mxu0 0
    %851 = vmatpush2.bf16.msra.mxu0 0
    %852 = vmatprep.subr.bf16.mxu0 0
    %853 = vmatpush2.bf16.msra.mxu0 0
    %854 = vmatprep.subr.bf16.mxu0 0
    %855 = vmatpush2.bf16.msra.mxu0 0
    %856 = vmatprep.subr.bf16.mxu0 0
    %857 = vmatpush2.bf16.msra.mxu0 0
    %858 = vmatprep.mubr.bf16.mxu0 0
    %859 = vmatmul.mubr.bf16.gmra.mxu0 %v810
    %v860 = vpop.f32.mrf.mxu0
    %v861 = vadd.f32 %v701, %v860
    %v862 = vpop.f32.mrf.mxu0
    %v863 = vpop.f32.mrf.mxu0
    %v864 = vadd.f32 %v706, %v863
    %v865 = vpop.f32.mrf.mxu0
    %866 = vmatprep.mubr.bf16.mxu0 0
    %867 = vmatmul.mubr.bf16.gmra.mxu0 %v811
    %v868 = vpop.f32.mrf.mxu0
    %v869 = vadd.f32 %v711, %v868
    %v870 = vpop.f32.mrf.mxu0
    %v871 = vpop.f32.mrf.mxu0
    %v872 = vadd.f32 %v716, %v871
    %v873 = vpop.f32.mrf.mxu0
    %874 = vmatprep.mubr.bf16.mxu0 0
    %875 = vmatmul.mubr.bf16.gmra.mxu0 %v812
    %v876 = vpop.f32.mrf.mxu0
    %v877 = vadd.f32 %v721, %v876
    %v878 = vpop.f32.mrf.mxu0
    %v879 = vpop.f32.mrf.mxu0
    %v880 = vadd.f32 %v726, %v879
    %v881 = vpop.f32.mrf.mxu0
    %882 = vmatprep.mubr.bf16.mxu0 0
    %883 = vmatmul.mubr.bf16.gmra.mxu0 %v813
    %v884 = vpop.f32.mrf.mxu0
    %v885 = vadd.f32 %v731, %v884
    %v886 = vpop.f32.mrf.mxu0
    %v887 = vpop.f32.mrf.mxu0
    %v888 = vadd.f32 %v736, %v887
    %v889 = vpop.f32.mrf.mxu0
    %890 = vmatprep.mubr.bf16.mxu0 0
    %891 = vmatmul.mubr.bf16.gmra.mxu0 %v814
    %v892 = vpop.f32.mrf.mxu0
    %v893 = vadd.f32 %v741, %v892
    %v894 = vpop.f32.mrf.mxu0
    %v895 = vpop.f32.mrf.mxu0
    %v896 = vadd.f32 %v746, %v895
    %v897 = vpop.f32.mrf.mxu0
    %898 = vmatprep.mubr.bf16.mxu0 0
    %899 = vmatmul.mubr.bf16.gmra.mxu0 %v815
    %v900 = vpop.f32.mrf.mxu0
    %v901 = vadd.f32 %v751, %v900
    %v902 = vpop.f32.mrf.mxu0
    %v903 = vpop.f32.mrf.mxu0
    %v904 = vadd.f32 %v756, %v903
    %v905 = vpop.f32.mrf.mxu0
    %906 = vmatprep.mubr.bf16.mxu0 0
    %907 = vmatmul.mubr.bf16.gmra.mxu0 %v816
    %v908 = vpop.f32.mrf.mxu0
    %v909 = vadd.f32 %v761, %v908
    %v910 = vpop.f32.mrf.mxu0
    %v911 = vpop.f32.mrf.mxu0
    %v912 = vadd.f32 %v766, %v911
    %v913 = vpop.f32.mrf.mxu0
    %914 = vmatprep.mubr.bf16.mxu0 0
    %915 = vmatmul.mubr.bf16.gmra.mxu0 %v817
    %v916 = vpop.f32.mrf.mxu0
    %v917 = vadd.f32 %v771, %v916
    %v918 = vpop.f32.mrf.mxu0
    %v919 = vpop.f32.mrf.mxu0
    %v920 = vadd.f32 %v776, %v919
    %v921 = vpop.f32.mrf.mxu0
    %922 = vdwg.mxu0
    %v923 = vmul.f32 %v861, 0.01
    %v924 = vmul.f32 %v864, 0.01
    %v925 = vmul.f32 %v869, 0.01
    %v926 = vmul.f32 %v872, 0.01
    %v927 = vmul.f32 %v877, 0.01
    %v928 = vmul.f32 %v880, 0.01
    %v929 = vmul.f32 %v885, 0.01
    %v930 = vmul.f32 %v888, 0.01
    %v931 = vmul.f32 %v893, 0.01
    %v932 = vmul.f32 %v896, 0.01
    %v933 = vmul.f32 %v901, 0.01
    %v934 = vmul.f32 %v904, 0.01
    %v935 = vmul.f32 %v909, 0.01
    %v936 = vmul.f32 %v912, 0.01
    %v937 = vmul.f32 %v917, 0.01
    %v938 = vmul.f32 %v920, 0.01
    %v939 = vmax.f32 %v861, %v923
    %v940 = vmax.f32 %v864, %v924
    %v941 = vmax.f32 %v869, %v925
    %v942 = vmax.f32 %v872, %v926
    %v943 = vmax.f32 %v877, %v927
    %v944 = vmax.f32 %v880, %v928
    %v945 = vmax.f32 %v885, %v929
    %v946 = vmax.f32 %v888, %v930
    %v947 = vmax.f32 %v893, %v931
    %v948 = vmax.f32 %v896, %v932
    %v949 = vmax.f32 %v901, %v933
    %v950 = vmax.f32 %v904, %v934
    %v951 = vmax.f32 %v909, %v935
    %v952 = vmax.f32 %v912, %v936
    %v953 = vmax.f32 %v917, %v937
    %v954 = vmax.f32 %v920, %v938
    %v955 = vadd.f32 %v939, %v640
    %v956 = vadd.f32 %v940, %v641
    %v957 = vadd.f32 %v941, %v642
    %v958 = vadd.f32 %v942, %v643
    %v959 = vadd.f32 %v943, %v644
    %v960 = vadd.f32 %v944, %v645
    %v961 = vadd.f32 %v945, %v646
    %v962 = vadd.f32 %v946, %v647
    %v963 = vadd.f32 %v947, %v648
    %v964 = vadd.f32 %v948, %v649
    %v965 = vadd.f32 %v949, %v650
    %v966 = vadd.f32 %v950, %v651
    %v967 = vadd.f32 %v951, %v652
    %v968 = vadd.f32 %v952, %v653
    %v969 = vadd.f32 %v953, %v654
    %v970 = vadd.f32 %v954, %v655
    %s971 = scalar_lea.vmem %s3, 128
    %v972 = vld [vmem:[%s971] sm:$0xf]
    %v973 = vld [vmem:[%s971 + $0x4] sm:$0xf]
    %v974 = vld [vmem:[%s971 + $0x8] sm:$0xf]
    %v975 = vld [vmem:[%s971 + $0xc] sm:$0xf]
    %v976 = vld [vmem:[%s971 + $0x10] sm:$0xf]
    %v977 = vld [vmem:[%s971 + $0x14] sm:$0xf]
    %v978 = vld [vmem:[%s971 + $0x18] sm:$0xf]
    %v979 = vld [vmem:[%s971 + $0x1c] sm:$0xf]
    %v980 = vld [vmem:[%s971 + $0x20] sm:$0xf]
    %v981 = vld [vmem:[%s971 + $0x24] sm:$0xf]
    %v982 = vld [vmem:[%s971 + $0x28] sm:$0xf]
    %v983 = vld [vmem:[%s971 + $0x2c] sm:$0xf]
    %v984 = vld [vmem:[%s971 + $0x30] sm:$0xf]
    %v985 = vld [vmem:[%s971 + $0x34] sm:$0xf]
    %v986 = vld [vmem:[%s971 + $0x38] sm:$0xf]
    %v987 = vld [vmem:[%s971 + $0x3c] sm:$0xf]
    %v988 = vpack.c.bf16 %v956, %v955
    %v989 = vpack.c.bf16 %v958, %v957
    %v990 = vpack.c.bf16 %v960, %v959
    %v991 = vpack.c.bf16 %v962, %v961
    %v992 = vpack.c.bf16 %v964, %v963
    %v993 = vpack.c.bf16 %v966, %v965
    %v994 = vpack.c.bf16 %v968, %v967
    %v995 = vpack.c.bf16 %v970, %v969
    %s996 = scalar_lea.vmem %s4, 256
    %v997 = vld [vmem:[%s996] sm:$0xff]
    %v998 = vld [vmem:[%s996 + $0x8] sm:$0xff]
    %v999 = vld [vmem:[%s996 + $0x10] sm:$0xff]
    %v1000 = vld [vmem:[%s996 + $0x18] sm:$0xff]
    %v1001 = vld [vmem:[%s996 + $0x20] sm:$0xff]
    %v1002 = vld [vmem:[%s996 + $0x28] sm:$0xff]
    %v1003 = vld [vmem:[%s996 + $0x30] sm:$0xff]
    %v1004 = vld [vmem:[%s996 + $0x38] sm:$0xff]
    %v1005 = vld [vmem:[%s996 + $0x40] sm:$0xff]
    %v1006 = vld [vmem:[%s996 + $0x48] sm:$0xff]
    %v1007 = vld [vmem:[%s996 + $0x50] sm:$0xff]
    %v1008 = vld [vmem:[%s996 + $0x58] sm:$0xff]
    %v1009 = vld [vmem:[%s996 + $0x60] sm:$0xff]
    %v1010 = vld [vmem:[%s996 + $0x68] sm:$0xff]
    %v1011 = vld [vmem:[%s996 + $0x70] sm:$0xff]
    %v1012 = vld [vmem:[%s996 + $0x78] sm:$0xff]
    %1014 = vset.pattern.permute.xlu0 0
    %1015 = vperm.xlu0 %1014, %v997
    %v1016 = vpop.permute.xlu0 %1015
    %1019 = vset.pattern.permute.xlu0 0
    %1020 = vperm.xlu0 %1019, %v998
    %v1021 = vpop.permute.xlu0 %1020
    %1024 = vset.pattern.permute.xlu0 0
    %1025 = vperm.xlu0 %1024, %v999
    %v1026 = vpop.permute.xlu0 %1025
    %1029 = vset.pattern.permute.xlu0 0
    %1030 = vperm.xlu0 %1029, %v1000
    %v1031 = vpop.permute.xlu0 %1030
    %1034 = vset.pattern.permute.xlu0 0
    %1035 = vperm.xlu0 %1034, %v1001
    %v1036 = vpop.permute.xlu0 %1035
    %1039 = vset.pattern.permute.xlu0 0
    %1040 = vperm.xlu0 %1039, %v1002
    %v1041 = vpop.permute.xlu0 %1040
    %1044 = vset.pattern.permute.xlu0 0
    %1045 = vperm.xlu0 %1044, %v1003
    %v1046 = vpop.permute.xlu0 %1045
    %1049 = vset.pattern.permute.xlu0 0
    %1050 = vperm.xlu0 %1049, %v1004
    %v1051 = vpop.permute.xlu0 %1050
    %1054 = vset.pattern.permute.xlu0 0
    %1055 = vperm.xlu0 %1054, %v1005
    %v1056 = vpop.permute.xlu0 %1055
    %1059 = vset.pattern.permute.xlu0 0
    %1060 = vperm.xlu0 %1059, %v1006
    %v1061 = vpop.permute.xlu0 %1060
    %1064 = vset.pattern.permute.xlu0 0
    %1065 = vperm.xlu0 %1064, %v1007
    %v1066 = vpop.permute.xlu0 %1065
    %1069 = vset.pattern.permute.xlu0 0
    %1070 = vperm.xlu0 %1069, %v1008
    %v1071 = vpop.permute.xlu0 %1070
    %1074 = vset.pattern.permute.xlu0 0
    %1075 = vperm.xlu0 %1074, %v1009
    %v1076 = vpop.permute.xlu0 %1075
    %1079 = vset.pattern.permute.xlu0 0
    %1080 = vperm.xlu0 %1079, %v1010
    %v1081 = vpop.permute.xlu0 %1080
    %1084 = vset.pattern.permute.xlu0 0
    %1085 = vperm.xlu0 %1084, %v1011
    %v1086 = vpop.permute.xlu0 %1085
    %1089 = vset.pattern.permute.xlu0 0
    %1090 = vperm.xlu0 %1089, %v1012
    %v1091 = vpop.permute.xlu0 %1090
    %v1109 = vunpack.c.l.b16 %v972
    %v1110 = vunpack.c.l.b16 %v973
    %v1111 = vunpack.c.l.b16 %v974
    %v1112 = vunpack.c.l.b16 %v975
    %v1113 = vunpack.c.l.b16 %v976
    %v1114 = vunpack.c.l.b16 %v977
    %v1115 = vunpack.c.l.b16 %v978
    %v1116 = vunpack.c.l.b16 %v979
    %v1117 = vunpack.c.l.b16 %v980
    %v1118 = vunpack.c.l.b16 %v981
    %v1119 = vunpack.c.l.b16 %v982
    %v1120 = vunpack.c.l.b16 %v983
    %v1121 = vunpack.c.l.b16 %v984
    %v1122 = vunpack.c.l.b16 %v985
    %v1123 = vunpack.c.l.b16 %v986
    %v1124 = vunpack.c.l.b16 %v987
    %v1125 = vpack.c.b16 %v1110, %v1109
    %v1126 = vpack.c.b16 %v1112, %v1111
    %v1127 = vpack.c.b16 %v1114, %v1113
    %v1128 = vpack.c.b16 %v1116, %v1115
    %v1129 = vpack.c.b16 %v1118, %v1117
    %v1130 = vpack.c.b16 %v1120, %v1119
    %v1131 = vpack.c.b16 %v1122, %v1121
    %v1132 = vpack.c.b16 %v1124, %v1123
    %1141 = vmatprep.subr.bf16.mxu0 0
    %1142 = vmatpush1.bf16.msra.mxu0 %v995
    %1143 = vmatprep.subr.bf16.mxu0 0
    %1144 = vmatpush1.bf16.msra.mxu0 %v994
    %1145 = vmatprep.subr.bf16.mxu0 0
    %1146 = vmatpush1.bf16.msra.mxu0 %v993
    %1147 = vmatprep.subr.bf16.mxu0 0
    %1148 = vmatpush1.bf16.msra.mxu0 %v992
    %1149 = vmatprep.subr.bf16.mxu0 0
    %1150 = vmatpush1.bf16.msra.mxu0 %v991
    %1151 = vmatprep.subr.bf16.mxu0 0
    %1152 = vmatpush1.bf16.msra.mxu0 %v990
    %1153 = vmatprep.subr.bf16.mxu0 0
    %1154 = vmatpush1.bf16.msra.mxu0 %v989
    %1155 = vmatprep.subr.bf16.mxu0 0
    %1156 = vmatpush1.bf16.msra.mxu0 %v988
    %1157 = vmatprep.subr.bf16.mxu0 0
    %1158 = vmatpush2.bf16.msra.mxu0 0
    %1159 = vmatprep.subr.bf16.mxu0 0
    %1160 = vmatpush2.bf16.msra.mxu0 0
    %1161 = vmatprep.subr.bf16.mxu0 0
    %1162 = vmatpush2.bf16.msra.mxu0 0
    %1163 = vmatprep.subr.bf16.mxu0 0
    %1164 = vmatpush2.bf16.msra.mxu0 0
    %1165 = vmatprep.subr.bf16.mxu0 0
    %1166 = vmatpush2.bf16.msra.mxu0 0
    %1167 = vmatprep.subr.bf16.mxu0 0
    %1168 = vmatpush2.bf16.msra.mxu0 0
    %1169 = vmatprep.subr.bf16.mxu0 0
    %1170 = vmatpush2.bf16.msra.mxu0 0
    %1171 = vmatprep.subr.bf16.mxu0 0
    %1172 = vmatpush2.bf16.msra.mxu0 0
    %1173 = vmatprep.mubr.bf16.mxu0 0
    %1174 = vmatmul.mubr.bf16.gmra.mxu0 %v1125
    %v1175 = vpop.f32.mrf.mxu0
    %v1176 = vadd.f32 %v1016, %v1175
    %v1177 = vpop.f32.mrf.mxu0
    %v1178 = vpop.f32.mrf.mxu0
    %v1179 = vadd.f32 %v1021, %v1178
    %v1180 = vpop.f32.mrf.mxu0
    %1181 = vmatprep.mubr.bf16.mxu0 0
    %1182 = vmatmul.mubr.bf16.gmra.mxu0 %v1126
    %v1183 = vpop.f32.mrf.mxu0
    %v1184 = vadd.f32 %v1026, %v1183
    %v1185 = vpop.f32.mrf.mxu0
    %v1186 = vpop.f32.mrf.mxu0
    %v1187 = vadd.f32 %v1031, %v1186
    %v1188 = vpop.f32.mrf.mxu0
    %1189 = vmatprep.mubr.bf16.mxu0 0
    %1190 = vmatmul.mubr.bf16.gmra.mxu0 %v1127
    %v1191 = vpop.f32.mrf.mxu0
    %v1192 = vadd.f32 %v1036, %v1191
    %v1193 = vpop.f32.mrf.mxu0
    %v1194 = vpop.f32.mrf.mxu0
    %v1195 = vadd.f32 %v1041, %v1194
    %v1196 = vpop.f32.mrf.mxu0
    %1197 = vmatprep.mubr.bf16.mxu0 0
    %1198 = vmatmul.mubr.bf16.gmra.mxu0 %v1128
    %v1199 = vpop.f32.mrf.mxu0
    %v1200 = vadd.f32 %v1046, %v1199
    %v1201 = vpop.f32.mrf.mxu0
    %v1202 = vpop.f32.mrf.mxu0
    %v1203 = vadd.f32 %v1051, %v1202
    %v1204 = vpop.f32.mrf.mxu0
    %1205 = vmatprep.mubr.bf16.mxu0 0
    %1206 = vmatmul.mubr.bf16.gmra.mxu0 %v1129
    %v1207 = vpop.f32.mrf.mxu0
    %v1208 = vadd.f32 %v1056, %v1207
    %v1209 = vpop.f32.mrf.mxu0
    %v1210 = vpop.f32.mrf.mxu0
    %v1211 = vadd.f32 %v1061, %v1210
    %v1212 = vpop.f32.mrf.mxu0
    %1213 = vmatprep.mubr.bf16.mxu0 0
    %1214 = vmatmul.mubr.bf16.gmra.mxu0 %v1130
    %v1215 = vpop.f32.mrf.mxu0
    %v1216 = vadd.f32 %v1066, %v1215
    %v1217 = vpop.f32.mrf.mxu0
    %v1218 = vpop.f32.mrf.mxu0
    %v1219 = vadd.f32 %v1071, %v1218
    %v1220 = vpop.f32.mrf.mxu0
    %1221 = vmatprep.mubr.bf16.mxu0 0
    %1222 = vmatmul.mubr.bf16.gmra.mxu0 %v1131
    %v1223 = vpop.f32.mrf.mxu0
    %v1224 = vadd.f32 %v1076, %v1223
    %v1225 = vpop.f32.mrf.mxu0
    %v1226 = vpop.f32.mrf.mxu0
    %v1227 = vadd.f32 %v1081, %v1226
    %v1228 = vpop.f32.mrf.mxu0
    %1229 = vmatprep.mubr.bf16.mxu0 0
    %1230 = vmatmul.mubr.bf16.gmra.mxu0 %v1132
    %v1231 = vpop.f32.mrf.mxu0
    %v1232 = vadd.f32 %v1086, %v1231
    %v1233 = vpop.f32.mrf.mxu0
    %v1234 = vpop.f32.mrf.mxu0
    %v1235 = vadd.f32 %v1091, %v1234
    %v1236 = vpop.f32.mrf.mxu0
    %1237 = vdwg.mxu0
    %v1238 = vmul.f32 %v1176, 0.01
    %v1239 = vmul.f32 %v1179, 0.01
    %v1240 = vmul.f32 %v1184, 0.01
    %v1241 = vmul.f32 %v1187, 0.01
    %v1242 = vmul.f32 %v1192, 0.01
    %v1243 = vmul.f32 %v1195, 0.01
    %v1244 = vmul.f32 %v1200, 0.01
    %v1245 = vmul.f32 %v1203, 0.01
    %v1246 = vmul.f32 %v1208, 0.01
    %v1247 = vmul.f32 %v1211, 0.01
    %v1248 = vmul.f32 %v1216, 0.01
    %v1249 = vmul.f32 %v1219, 0.01
    %v1250 = vmul.f32 %v1224, 0.01
    %v1251 = vmul.f32 %v1227, 0.01
    %v1252 = vmul.f32 %v1232, 0.01
    %v1253 = vmul.f32 %v1235, 0.01
    %v1254 = vmax.f32 %v1176, %v1238
    %v1255 = vmax.f32 %v1179, %v1239
    %v1256 = vmax.f32 %v1184, %v1240
    %v1257 = vmax.f32 %v1187, %v1241
    %v1258 = vmax.f32 %v1192, %v1242
    %v1259 = vmax.f32 %v1195, %v1243
    %v1260 = vmax.f32 %v1200, %v1244
    %v1261 = vmax.f32 %v1203, %v1245
    %v1262 = vmax.f32 %v1208, %v1246
    %v1263 = vmax.f32 %v1211, %v1247
    %v1264 = vmax.f32 %v1216, %v1248
    %v1265 = vmax.f32 %v1219, %v1249
    %v1266 = vmax.f32 %v1224, %v1250
    %v1267 = vmax.f32 %v1227, %v1251
    %v1268 = vmax.f32 %v1232, %v1252
    %v1269 = vmax.f32 %v1235, %v1253
    %v1270 = vadd.f32 %v1254, %v955
    %v1271 = vadd.f32 %v1255, %v956
    %v1272 = vadd.f32 %v1256, %v957
    %v1273 = vadd.f32 %v1257, %v958
    %v1274 = vadd.f32 %v1258, %v959
    %v1275 = vadd.f32 %v1259, %v960
    %v1276 = vadd.f32 %v1260, %v961
    %v1277 = vadd.f32 %v1261, %v962
    %v1278 = vadd.f32 %v1262, %v963
    %v1279 = vadd.f32 %v1263, %v964
    %v1280 = vadd.f32 %v1264, %v965
    %v1281 = vadd.f32 %v1265, %v966
    %v1282 = vadd.f32 %v1266, %v967
    %v1283 = vadd.f32 %v1267, %v968
    %v1284 = vadd.f32 %v1268, %v969
    %v1285 = vadd.f32 %v1269, %v970
    %v1286 = vld [vmem:[%s5] sm:$0xff]
    %v1287 = vld [vmem:[%s5 + $0x8] sm:$0xff]
    %v1288 = vld [vmem:[%s5 + $0x10] sm:$0xff]
    %v1289 = vld [vmem:[%s5 + $0x18] sm:$0xff]
    %v1290 = vld [vmem:[%s5 + $0x20] sm:$0xff]
    %v1291 = vld [vmem:[%s5 + $0x28] sm:$0xff]
    %v1292 = vld [vmem:[%s5 + $0x30] sm:$0xff]
    %v1293 = vld [vmem:[%s5 + $0x38] sm:$0xff]
    %v1294 = vld [vmem:[%s5 + $0x40] sm:$0xff]
    %v1295 = vld [vmem:[%s5 + $0x48] sm:$0xff]
    %v1296 = vld [vmem:[%s5 + $0x50] sm:$0xff]
    %v1297 = vld [vmem:[%s5 + $0x58] sm:$0xff]
    %v1298 = vld [vmem:[%s5 + $0x60] sm:$0xff]
    %v1299 = vld [vmem:[%s5 + $0x68] sm:$0xff]
    %v1300 = vld [vmem:[%s5 + $0x70] sm:$0xff]
    %v1301 = vld [vmem:[%s5 + $0x78] sm:$0xff]
    %1303 = vset.pattern.permute.xlu0 0
    %1304 = vperm.xlu0 %1303, %v1286
    %v1305 = vpop.permute.xlu0 %1304
    %1308 = vset.pattern.permute.xlu0 0
    %1309 = vperm.xlu0 %1308, %v1287
    %v1310 = vpop.permute.xlu0 %1309
    %1313 = vset.pattern.permute.xlu0 0
    %1314 = vperm.xlu0 %1313, %v1288
    %v1315 = vpop.permute.xlu0 %1314
    %1318 = vset.pattern.permute.xlu0 0
    %1319 = vperm.xlu0 %1318, %v1289
    %v1320 = vpop.permute.xlu0 %1319
    %1323 = vset.pattern.permute.xlu0 0
    %1324 = vperm.xlu0 %1323, %v1290
    %v1325 = vpop.permute.xlu0 %1324
    %1328 = vset.pattern.permute.xlu0 0
    %1329 = vperm.xlu0 %1328, %v1291
    %v1330 = vpop.permute.xlu0 %1329
    %1333 = vset.pattern.permute.xlu0 0
    %1334 = vperm.xlu0 %1333, %v1292
    %v1335 = vpop.permute.xlu0 %1334
    %1338 = vset.pattern.permute.xlu0 0
    %1339 = vperm.xlu0 %1338, %v1293
    %v1340 = vpop.permute.xlu0 %1339
    %1343 = vset.pattern.permute.xlu0 0
    %1344 = vperm.xlu0 %1343, %v1294
    %v1345 = vpop.permute.xlu0 %1344
    %1348 = vset.pattern.permute.xlu0 0
    %1349 = vperm.xlu0 %1348, %v1295
    %v1350 = vpop.permute.xlu0 %1349
    %1353 = vset.pattern.permute.xlu0 0
    %1354 = vperm.xlu0 %1353, %v1296
    %v1355 = vpop.permute.xlu0 %1354
    %1358 = vset.pattern.permute.xlu0 0
    %1359 = vperm.xlu0 %1358, %v1297
    %v1360 = vpop.permute.xlu0 %1359
    %1363 = vset.pattern.permute.xlu0 0
    %1364 = vperm.xlu0 %1363, %v1298
    %v1365 = vpop.permute.xlu0 %1364
    %1368 = vset.pattern.permute.xlu0 0
    %1369 = vperm.xlu0 %1368, %v1299
    %v1370 = vpop.permute.xlu0 %1369
    %1373 = vset.pattern.permute.xlu0 0
    %1374 = vperm.xlu0 %1373, %v1300
    %v1375 = vpop.permute.xlu0 %1374
    %1378 = vset.pattern.permute.xlu0 0
    %1379 = vperm.xlu0 %1378, %v1301
    %v1380 = vpop.permute.xlu0 %1379
    %v1382 = vmul.f32 %v1270, %v1305
    %v1383 = vmul.f32 %v1271, %v1310
    %v1384 = vmul.f32 %v1272, %v1315
    %v1385 = vmul.f32 %v1273, %v1320
    %v1386 = vmul.f32 %v1274, %v1325
    %v1387 = vmul.f32 %v1275, %v1330
    %v1388 = vmul.f32 %v1276, %v1335
    %v1389 = vmul.f32 %v1277, %v1340
    %v1390 = vmul.f32 %v1278, %v1345
    %v1391 = vmul.f32 %v1279, %v1350
    %v1392 = vmul.f32 %v1280, %v1355
    %v1393 = vmul.f32 %v1281, %v1360
    %v1394 = vmul.f32 %v1282, %v1365
    %v1395 = vmul.f32 %v1283, %v1370
    %v1396 = vmul.f32 %v1284, %v1375
    %v1397 = vmul.f32 %v1285, %v1380
    %vm1398 = vcmask 64512
    %v1399 = vsel %vm1398, %v1382, 0.0
    %v1400 = vsel %vm1398, %v1383, 0.0
    %v1401 = vadd.f32 %v1399, %v1400
    %v1402 = vsel %vm1398, %v1384, 0.0
    %v1403 = vadd.f32 %v1401, %v1402
    %v1404 = vsel %vm1398, %v1385, 0.0
    %v1405 = vadd.f32 %v1403, %v1404
    %v1406 = vsel %vm1398, %v1386, 0.0
    %v1407 = vadd.f32 %v1405, %v1406
    %v1408 = vsel %vm1398, %v1387, 0.0
    %v1409 = vadd.f32 %v1407, %v1408
    %v1410 = vsel %vm1398, %v1388, 0.0
    %v1411 = vadd.f32 %v1409, %v1410
    %v1412 = vsel %vm1398, %v1389, 0.0
    %v1413 = vadd.f32 %v1411, %v1412
    %v1414 = vsel %vm1398, %v1390, 0.0
    %v1415 = vadd.f32 %v1413, %v1414
    %v1416 = vsel %vm1398, %v1391, 0.0
    %v1417 = vadd.f32 %v1415, %v1416
    %v1418 = vsel %vm1398, %v1392, 0.0
    %v1419 = vadd.f32 %v1417, %v1418
    %v1420 = vsel %vm1398, %v1393, 0.0
    %v1421 = vadd.f32 %v1419, %v1420
    %v1422 = vsel %vm1398, %v1394, 0.0
    %v1423 = vadd.f32 %v1421, %v1422
    %v1424 = vsel %vm1398, %v1395, 0.0
    %v1425 = vadd.f32 %v1423, %v1424
    %v1426 = vsel %vm1398, %v1396, 0.0
    %v1427 = vadd.f32 %v1425, %v1426
    %v1428 = vsel %vm1398, %v1397, 0.0
    %v1429 = vadd.f32 %v1427, %v1428
    %v1430 = vrot.slane %v1429, 4
    %v1431 = vadd.f32 %v1429, %v1430
    %v1432 = vrot.slane %v1431, 2
    %v1433 = vadd.f32 %v1431, %v1432
    %v1434 = vrot.slane %v1433, 1
    %v1435 = vadd.f32 %v1433, %v1434
    %v1436 = vld [vmem:[#allocation2] sm:$0x1]
    %1438 = vset.pattern.permute.xlu0 0
    %1439 = vperm.xlu0 %1438, %v1436
    %v1440 = vpop.permute.xlu0 %1439
    %v1442 = vlaneseq
    %v1443 = vshrl.u32 %v1442, 7
    %v1444 = vsub.s32 0, %v1443
    %v1445 = vrot.slane %v1440, %v1444
    %v1446 = vadd.f32 %v1435, %v1445
    %v1447 = vld [vmem:[%s7] sm:$0x1]
    %v1448 = vmul.f32 %v1446, %v1447
    %vm1449 = vcmask 57344
    %1450 = vst.msk [vmem:[#allocation3] sm:$0x1] %vm1449, %v1448
    // Predicated region
    $region34: #{tpu_custom_call.1} parent=1 // pred_check
      _
    $region35: #{tpu_custom_call.1} parent=1 // pred_check_branch
      %1452 = sbr.rel (0) target = $region37
    $region36: #{tpu_custom_call.1} parent=1 // pred_region
      %s1454 = ssub.s32 16, 16
      %1455 = vsyncadd [#allocation4], %s1454
      %s1457 = sshll.u32 [#allocation3], 4
      %s1458 = int_to_ptr.vmem [resolvable:$true] %s1457
      %1460 = dma.vmem_to_hbm [thread:$0]  %s1458, 16, %s8, [#allocation4]
    $region37: #{tpu_custom_call.1} parent=1 // pred_fallthru
      _
    // Predicated region
    $region38: #{tpu_custom_call.1} parent=1 // pred_check
      _
    $region39: #{tpu_custom_call.1} parent=1 // pred_check_branch
      %1462 = sbr.rel (0) target = $region41
    $region40: #{tpu_custom_call.1} parent=1 // pred_region
      %1463 = dma.done [#allocation4], 16
    $region41: #{tpu_custom_call.1} parent=1 // pred_fallthru
      _
    %1464 = vsyncpa [#allocation4], 1

</llo_original>
